<compile_context>
chip_gen: v7x
topology: tpu7x:2x2x1
jax: 0.10.0
libtpu: 0.0.40
codegen_flags: <defaults>
</compile_context>

<pallas_src>
import functools

import jax
import jax.numpy as jnp
from jax import lax
from jax.experimental import pallas as pl
from jax.experimental.pallas import tpu as pltpu

LANE = 128
SUBLANE = 8

# Contract last dim of lhs with last dim of rhs (i.e. lhs @ rhs^T, no transpose).
_LAST_LAST = (((1,), (1,)), ((), ()))
# Standard matmul: last dim of lhs with first dim of rhs.
_LAST_FIRST = (((1,), (0,)), ((), ()))

# Per-method M-tile targets (concat unrolls a short static loop over rows).
_TM_TARGET = {"dot": 128, "general": 128, "concat": 8}


def _round_up(x, m):
    return ((x + m - 1) // m) * m


# ----------------------------------------------------------------------------
# In-kernel helpers
# ----------------------------------------------------------------------------
def _masked_softmax(e, s_valid):
    """Row softmax over the lane axis; lanes >= s_valid (key padding) -> 0.

    Exact normalization (plain divide): the denominator is an (M, 1) column so
    an approximate EUP reciprocal buys nothing and broke sum(p)==1 to ~4e-3.
    """
    lane = lax.broadcasted_iota(jnp.int32, e.shape, 1)
    e = jnp.where(lane < s_valid, e, -jnp.inf)
    m = jnp.max(e, axis=-1, keepdims=True)
    p = jnp.exp(e - m)
    return p / jnp.sum(p, axis=-1, keepdims=True)


# ----------------------------------------------------------------------------
# Kernels (grid over the query/M axis; keys & weights fully VMEM resident)
# ----------------------------------------------------------------------------
def _dot_kernel(s_ref, q_ref, k_ref, o_ref):
    # energies = Q @ K^T  -> (TM, S_pad); contraction over H on the MXU.
    e = lax.dot_general(q_ref[...], k_ref[...], dimension_numbers=_LAST_LAST,
                        preferred_element_type=jnp.float32)
    o_ref[...] = _masked_softmax(e, s_ref[0]).astype(o_ref.dtype)


def _general_kernel(s_ref, q_ref, k_ref, w_ref, b_ref, o_ref):
    # sum(q * (K @ W^T + b), -1) == (q @ W) @ K^T + q.b
    # -> never materialize the (S, H) energy matrix.
    u = lax.dot_general(q_ref[...], w_ref[...], dimension_numbers=_LAST_FIRST,
                        preferred_element_type=jnp.float32)            # (TM, H)
    c = jnp.sum(q_ref[...].astype(jnp.float32) * b_ref[...],
                axis=-1, keepdims=True)                                # (TM, 1) = q.b
    e = lax.dot_general(u.astype(k_ref.dtype), k_ref[...],
                        dimension_numbers=_LAST_LAST,
                        preferred_element_type=jnp.float32) + c        # (TM, S_pad)
    o_ref[...] = _masked_softmax(e, s_ref[0]).astype(o_ref.dtype)


def _concat_kernel(tm, s_ref, q_ref, k_ref, wq_ref, wk_ref, b_ref, v_ref, o_ref):
    # tanh(W [q; k_s] + b) == tanh(Wq q + Wk k_s + b): the (S, 2H) concat is
    # never built.  The key-side projection is computed once per M-tile and the
    # bias is folded into the (TM, H) query projection (one small add instead
    # of two full (S, H) broadcast adds).
    s_valid = s_ref[0]
    kproj = lax.dot_general(k_ref[...], wk_ref[...], dimension_numbers=_LAST_LAST,
                            preferred_element_type=jnp.float32)        # (S_pad, H)
    qb = lax.dot_general(q_ref[...], wq_ref[...], dimension_numbers=_LAST_LAST,
                         preferred_element_type=jnp.float32) + b_ref[...]  # (TM, H)
    # TODO(synk): for production S, add an "arbitrary" grid axis over S with a
    # VMEM scratch for kproj (computed under pl.when) instead of whole-S residency.
    for m in range(tm):                     # static unroll; tm is small (<= 8)
        energy = jnp.tanh(kproj + qb[m:m + 1, :])                      # (S_pad, H)
        e = lax.dot_general(v_ref[...], energy, dimension_numbers=_LAST_LAST,
                            preferred_element_type=jnp.float32)        # (1, S_pad)
        o_ref[m:m + 1, :] = _masked_softmax(e, s_valid).astype(o_ref.dtype)


# ----------------------------------------------------------------------------
# One-time prep (hoisted out of the per-decode-step forward path)
# ----------------------------------------------------------------------------
def prepare_attention(method, params, keys, *, compute_dtype=jnp.float32):
    """Pad keys to a lane multiple, cast keys/weights to compute_dtype (bf16
    recommended on TPU: halves HBM traffic, MXU-native), split the concat
    weight into Wq/Wk.  Do this once per encoder sequence and reuse it for
    every decode step."""
    if method not in ("dot", "general", "concat"):
        raise ValueError(f"{method!r} is not an appropriate attention method, "
                         "choose from dot, general, and concat.")
    keys = jnp.asarray(keys)
    S, H = keys.shape
    S_pad = _round_up(max(S, LANE), LANE)
    k = jnp.pad(keys, ((0, S_pad - S), (0, 0))).astype(compute_dtype)

    prep = {
        "keys": k,
        "s_valid": jnp.array([S], jnp.int32),
        "seq_len": S,
        "hidden": H,
        "compute_dtype": compute_dtype,
    }
    if method == "general":
        prep["w"] = jnp.asarray(params["attn_w"]).astype(compute_dtype)       # (H, H)
        prep["b"] = jnp.asarray(params["attn_b"]).reshape(1, H).astype(jnp.float32)
    elif method == "concat":
        w = jnp.asarray(params["attn_w"])                                     # (H, 2H)
        prep["wq"] = w[:, :H].astype(compute_dtype)
        prep["wk"] = w[:, H:].astype(compute_dtype)
        prep["b"] = jnp.asarray(params["attn_b"]).reshape(1, H).astype(jnp.float32)
        prep["v"] = jnp.asarray(params["v"]).reshape(1, H).astype(jnp.float32)
    return prep


# ----------------------------------------------------------------------------
# Forward
# ----------------------------------------------------------------------------
def attn_forward_prepared(method, prep, query):
    """query: (H,), (1, H) or (M, H).  Returns (M, S) softmax rows (f32)."""
    H, S = prep["hidden"], prep["seq_len"]
    k = prep["keys"]
    S_pad = k.shape[0]
    dtype = prep["compute_dtype"]

    q = jnp.asarray(query).reshape(-1, H)
    M = q.shape[0]
    target = _TM_TARGET[method]
    if M <= target:
        M_pad = _round_up(M, SUBLANE)
        tm = M_pad
    else:
        M_pad = _round_up(M, target)
        tm = target
    if M_pad != M:
        q = jnp.pad(q, ((0, M_pad - M), (0, 0)))   # zero query rows: harmless, sliced off
    q = q.astype(dtype)

    grid = (M_pad // tm,)
    out_shape = jax.ShapeDtypeStruct((M_pad, S_pad), jnp.float32)
    q_spec = pl.BlockSpec((tm, H), lambda i, s: (i, 0))
    k_spec = pl.BlockSpec((S_pad, H), lambda i, s: (0, 0))
    out_spec = pl.BlockSpec((tm, S_pad), lambda i, s: (i, 0))
    full = lambda shape: pl.BlockSpec(shape, lambda i, s: (0, 0))
    cparams = pltpu.CompilerParams(dimension_semantics=("parallel",))

    bytes_fixed = (q.size * q.dtype.itemsize + k.size * k.dtype.itemsize
                   + M_pad * S_pad * 4)

    if method == "dot":
        cost = pl.CostEstimate(flops=2 * M_pad * S_pad * H,
                               transcendentals=M_pad * S_pad,
                               bytes_accessed=bytes_fixed)
        out = pl.pallas_call(
            _dot_kernel,
            out_shape=out_shape,
            grid_spec=pltpu.PrefetchScalarGridSpec(
                num_scalar_prefetch=1, grid=grid,
                in_specs=[q_spec, k_spec],
                out_specs=out_spec),
            compiler_params=cparams,
            cost_estimate=cost,
        )(prep["s_valid"], q, k)

    elif method == "general":
        w, b = prep["w"], prep["b"]
        cost = pl.CostEstimate(
            flops=2 * M_pad * H * H + 2 * M_pad * S_pad * H,
            transcendentals=M_pad * S_pad,
            bytes_accessed=bytes_fixed + w.size * w.dtype.itemsize + b.size * 4)
        out = pl.pallas_call(
            _general_kernel,
            out_shape=out_shape,
            grid_spec=pltpu.PrefetchScalarGridSpec(
                num_scalar_prefetch=1, grid=grid,
                in_specs=[q_spec, k_spec, full((H, H)), full((1, H))],
                out_specs=out_spec),
            compiler_params=cparams,
            cost_estimate=cost,
        )(prep["s_valid"], q, k, w, b)

    else:  # concat
        wq, wk, b, v = prep["wq"], prep["wk"], prep["b"], prep["v"]
        n_blocks = M_pad // tm
        cost = pl.CostEstimate(
            flops=(2 * S_pad * H * H * n_blocks + 2 * M_pad * H * H
                   + 4 * M_pad * S_pad * H),
            transcendentals=M_pad * S_pad * H + M_pad * S_pad,
            bytes_accessed=(bytes_fixed
                            + (wq.size + wk.size) * wq.dtype.itemsize
                            + (b.size + v.size) * 4))
        out = pl.pallas_call(
            functools.partial(_concat_kernel, tm),
            out_shape=out_shape,
            grid_spec=pltpu.PrefetchScalarGridSpec(
                num_scalar_prefetch=1, grid=grid,
                in_specs=[q_spec, k_spec, full((H, H)), full((H, H)),
                          full((1, H)), full((1, H))],
                out_specs=out_spec),
            compiler_params=cparams,
            cost_estimate=cost,
        )(prep["s_valid"], q, k, wq, wk, b, v)

    return out[:M, :S]


def attn_forward(method, params, query, keys, *, compute_dtype=jnp.float32):
    """Convenience one-shot wrapper mirroring Attn.forward (query -> (1, S))."""
    prep = prepare_attention(method, params, keys, compute_dtype=compute_dtype)
    return attn_forward_prepared(method, prep, query)


# ----------------------------------------------------------------------------
# Pure-JAX reference (mirrors the PyTorch forward exactly) for verification
# ----------------------------------------------------------------------------
def _attn_reference_single(method, params, query, keys):
    q = jnp.asarray(query, jnp.float32).reshape(1, -1)
    k = jnp.asarray(keys, jnp.float32)
    S, H = k.shape
    if method == "dot":
        e = jnp.sum(q * k, axis=-1)[None, :]
    elif method == "general":
        energy = k @ jnp.asarray(params["attn_w"], jnp.float32).T \
                 + jnp.asarray(params["attn_b"], jnp.float32)
        e = jnp.sum(q * energy, axis=-1)[None, :]
    else:  # concat
        cat = jnp.concatenate([jnp.broadcast_to(q, (S, H)), k], axis=-1)
        energy = jnp.tanh(cat @ jnp.asarray(params["attn_w"], jnp.float32).T
                          + jnp.asarray(params["attn_b"], jnp.float32))
        e = jnp.sum(jnp.asarray(params["v"], jnp.float32) * energy, axis=-1)[None, :]
    return jax.nn.softmax(e, axis=1)


def attn_reference(method, params, query, keys):
    q = jnp.asarray(query, jnp.float32).reshape(-1, keys.shape[-1])
    rows = [_attn_reference_single(method, params, q[m], keys)
            for m in range(q.shape[0])]
    return jnp.concatenate(rows, axis=0)


# ----------------------------------------------------------------------------
# Deterministic parameter construction (synthetic init, no checkpoint)
# ----------------------------------------------------------------------------
def make_params(key, method, hidden_size, init_range=0.1):
    params = {}
    if method == "general":
        k1, k2 = jax.random.split(key)
        bound = 1.0 / jnp.sqrt(hidden_size)
        params["attn_w"] = jax.random.uniform(
            k1, (hidden_size, hidden_size), jnp.float32, -bound, bound)
        params["attn_b"] = jax.random.uniform(
            k2, (hidden_size,), jnp.float32, -bound, bound)
    elif method == "concat":
        k1, k2, k3 = jax.random.split(key, 3)
        bound = 1.0 / jnp.sqrt(2 * hidden_size)
        params["attn_w"] = jax.random.uniform(
            k1, (hidden_size, 2 * hidden_size), jnp.float32, -bound, bound)
        params["attn_b"] = jax.random.uniform(
            k2, (hidden_size,), jnp.float32, -bound, bound)
        params["v"] = jax.random.uniform(
            k3, (hidden_size,), jnp.float32, -init_range, init_range)
    return params


def _bf16_roundtrip(x):
    return jnp.asarray(x).astype(jnp.bfloat16).astype(jnp.float32)


if __name__ == "__main__":
    HIDDEN = 32
    SEQ = 8
    M_BATCH = 4

    root = jax.random.PRNGKey(0)
    kq, kk, kp, kb = jax.random.split(root, 4)
    query = jax.random.normal(kq, (HIDDEN,), jnp.float32)        # single decoder query
    queries = jax.random.normal(kb, (M_BATCH, HIDDEN), jnp.float32)  # batched queries
    keys = jax.random.normal(kk, (SEQ, HIDDEN), jnp.float32)

    ok = True
    for method in ["dot", "general", "concat"]:
        params = make_params(kp, method, HIDDEN)

        # ---- f32 path: exact module semantics, single query -----------------
        out = jax.block_until_ready(attn_forward(method, params, query, keys))
        ref = attn_reference(method, params, query, keys)
        assert out.shape == (1, SEQ)
        if not jnp.allclose(out, ref, atol=1e-3, rtol=1e-3):
            ok = False
            print(f"MISMATCH (f32) for method={method}")
        if not jnp.allclose(jnp.sum(out, axis=1), 1.0, atol=1e-4):
            ok = False
            print(f"BAD NORMALIZATION (f32) for method={method}")

        # ---- bf16 keys/weights + batched queries (perf-review path) ---------
        prep = prepare_attention(method, params, keys, compute_dtype=jnp.bfloat16)
        out_b = jax.block_until_ready(attn_forward_prepared(method, prep, queries))
        assert out_b.shape == (M_BATCH, SEQ)
        # Reference from the same bf16-rounded keys/queries/weights (b, v stay f32,
        # matching the kernel), accumulated in f32.
        params_b = dict(params)
        if "attn_w" in params_b:
            params_b["attn_w"] = _bf16_roundtrip(params_b["attn_w"])
        ref_b = attn_reference(method, params_b,
                               _bf16_roundtrip(queries), _bf16_roundtrip(keys))
        if not jnp.allclose(out_b, ref_b, atol=3e-2, rtol=3e-2):
            ok = False
            print(f"MISMATCH (bf16) for method={method}")
        if not jnp.allclose(jnp.sum(out_b, axis=1), 1.0, atol=1e-4):
            ok = False
            print(f"BAD NORMALIZATION (bf16) for method={method}")

    if ok:
        print("KERNEL_OK")
</pallas_src>

<mosaic_0001>
module attributes {stable_mosaic.version = 11 : i64} {
  func.func @_dot_kernel(%arg0: i32, %arg1: memref<1xi32, #tpu.memory_space<smem>>, %arg2: memref<8x32xf32, #tpu.memory_space<vmem>>, %arg3: memref<128x32xf32, #tpu.memory_space<vmem>>, %arg4: memref<8x128xf32, #tpu.memory_space<vmem>>) attributes {dimension_semantics = [#tpu.dimension_semantics<parallel>], iteration_bounds = array<i64: 1>, scalar_prefetch = 1 : i64, scratch_operands = 0 : i64, tpu.core_type = #tpu.core_type<tc>, window_params = [{transform_indices = @transform_0, window_bounds = array<i64: 8, 32>}, {pipeline_mode = #tpu.pipeline_mode<synchronous>, transform_indices = @transform_1, window_bounds = array<i64: 128, 32>}, {transform_indices = @transform_2, window_bounds = array<i64: 8, 128>}]} {
    %c0 = arith.constant 0 : index
    %c0_0 = arith.constant 0 : index
    %0 = vector.load %arg2[%c0, %c0_0] : memref<8x32xf32, #tpu.memory_space<vmem>>, vector<8x32xf32>
    %c0_1 = arith.constant 0 : index
    %c0_2 = arith.constant 0 : index
    %1 = vector.load %arg3[%c0_1, %c0_2] : memref<128x32xf32, #tpu.memory_space<vmem>>, vector<128x32xf32>
    %cst = arith.constant dense<0.000000e+00> : vector<8x128xf32>
    %2 = tpu.matmul %0, %1, %cst {dimension_numbers = #tpu.dot_dimension_numbers<[1], [1], [0], [0], [0, 0, 1, 0], [], []>} : vector<8x32xf32>, vector<128x32xf32>, vector<8x128xf32> -> vector<8x128xf32>
    %c0_3 = arith.constant 0 : index
    %3 = memref.load %arg1[%c0_3] : memref<1xi32, #tpu.memory_space<smem>>
    %4 = tpu.iota {dimensions = array<i32: 1>} : vector<8x128xi32>
    %5 = vector.broadcast %3 : i32 to vector<8x128xi32>
    %6 = arith.cmpi slt, %4, %5 : vector<8x128xi32>
    %cst_4 = arith.constant 0xFF800000 : f32
    %7 = vector.broadcast %cst_4 : f32 to vector<8x128xf32>
    %8 = arith.select %6, %2, %7 : vector<8x128xi1>, vector<8x128xf32>
    %cst_5 = arith.constant dense<0xFF800000> : vector<8xf32>
    %9 = vector.multi_reduction <maximumf>, %8, %cst_5 [1] : vector<8x128xf32> to vector<8xf32>
    %10 = vector.shape_cast %9 : vector<8xf32> to vector<8x1xf32>
    %11 = vector.broadcast %10 : vector<8x1xf32> to vector<8x128xf32>
    %12 = arith.subf %8, %11 : vector<8x128xf32>
    %13 = math.exp %12 : vector<8x128xf32>
    %cst_6 = arith.constant dense<0.000000e+00> : vector<8xf32>
    %14 = vector.multi_reduction <add>, %13, %cst_6 [1] : vector<8x128xf32> to vector<8xf32>
    %15 = vector.shape_cast %14 : vector<8xf32> to vector<8x1xf32>
    %16 = vector.broadcast %15 : vector<8x1xf32> to vector<8x128xf32>
    %17 = arith.divf %13, %16 : vector<8x128xf32>
    %c0_7 = arith.constant 0 : index
    %c0_8 = arith.constant 0 : index
    %18 = vector.load %arg4[%c0_7, %c0_8] : memref<8x128xf32, #tpu.memory_space<vmem>>, vector<8x128xf32>
    tpu.vector_store %arg4[%c0_7, %c0_8], %17 {strides = array<i32>} : memref<8x128xf32, #tpu.memory_space<vmem>>, vector<8x128xf32>,
    return
  }
  func.func @transform_0(%arg0: i32, %arg1: memref<1xi32, #tpu.memory_space<smem>>) -> (i32, i32) {
    %c0_i32 = arith.constant 0 : i32
    %c0_i32_0 = arith.constant 0 : i32
    return %arg0, %c0_i32 : i32, i32
  }
  func.func @transform_1(%arg0: i32, %arg1: memref<1xi32, #tpu.memory_space<smem>>) -> (i32, i32) {
    %c0_i32 = arith.constant 0 : i32
    %c0_i32_0 = arith.constant 0 : i32
    %c0_i32_1 = arith.constant 0 : i32
    return %c0_i32, %c0_i32_0 : i32, i32
  }
  func.func @transform_2(%arg0: i32, %arg1: memref<1xi32, #tpu.memory_space<smem>>) -> (i32, i32) {
    %c0_i32 = arith.constant 0 : i32
    %c0_i32_0 = arith.constant 0 : i32
    return %arg0, %c0_i32 : i32, i32
  }
}

</mosaic_0001>

<llo_original>
// kernel: tpu_custom_call.1
$region0: #{tpu_custom_call.1}
  #allocation0 [shape = 'u32[]', space=smem, size = 0x4, offset = 0x4, fixed_abs, tag = 'smem constant byte address 0x4 - core index']
  #allocation1 [shape = 'u32[144,128]{1,0:T(1,128)}', space=vmem, size = 0x12000, scoped, tag = 'internal scratch']
  #allocation2 [shape = 's32[1]{0}', space=sflag, size = 0x4, scoped, tag = 'scoped memory for tpu_custom_call.1']
  #allocation3 [shape = 's32[1]{0:T(128)S(6)}', space=smem, size = 0x200, scoped, tag = 'prefetched SMEM operand 0']
  %s0 = inlined_call_operand.<no memory space> [shape: s32[1], index: 0, kind: input, shape index: {}]
  %s1 = inlined_call_operand.vmem [shape: f32[8,32], index: 1, kind: input, shape index: {}]
  %s2 = inlined_call_operand.vmem [shape: f32[128,32], index: 2, kind: input, shape index: {}]
  %s3 = inlined_call_operand.hbm [shape: f32[8,128], index: 3, kind: output, shape index: {}]
  %s4 = sld [smem:[#allocation0]]
  $region18: #{tpu_custom_call.1} parent=0
    _
  %s6 = ssub.s32 1, %s4
  %s7 = scalar_select 0, %s6, %s4
  %8 = sst [smem:[#allocation3]] %s0
  $region1: #{tpu_custom_call.1} parent=0
    #allocation4 [shape = 'u8[4096]{0}', space=vmem, size = 0x1000, scoped, tag = 'output window, operand 0, single buffered']
    #allocation5 [shape = 's32[1]{0}', space=sflag, size = 0x4, scoped, tag = 'scoped memory for tpu_custom_call.1']
    %9 = vsyncpa [#allocation5], 0
    // Predicated region
    $region2: #{tpu_custom_call.1} parent=1 // pred_check
      _
    $region3: #{tpu_custom_call.1} parent=1 // pred_check_branch
      %11 = sbr.rel (0) target = $region5
    $region4: #{tpu_custom_call.1} parent=1 // pred_region
      _
    $region5: #{tpu_custom_call.1} parent=1 // pred_fallthru
      _
    // Predicated region
    $region6: #{tpu_custom_call.1} parent=1 // pred_check
      _
    $region7: #{tpu_custom_call.1} parent=1 // pred_check_branch
      %13 = sbr.rel (0) target = $region9
    $region8: #{tpu_custom_call.1} parent=1 // pred_region
      _
    $region9: #{tpu_custom_call.1} parent=1 // pred_fallthru
      _
    %v14 = vld [vmem:[%s1] sm:$0xff]
    %v15 = vld [vmem:[%s2] sm:$0xff]
    %v16 = vld [vmem:[%s2 + $0x8] sm:$0xff]
    %v17 = vld [vmem:[%s2 + $0x10] sm:$0xff]
    %v18 = vld [vmem:[%s2 + $0x18] sm:$0xff]
    %v19 = vld [vmem:[%s2 + $0x20] sm:$0xff]
    %v20 = vld [vmem:[%s2 + $0x28] sm:$0xff]
    %v21 = vld [vmem:[%s2 + $0x30] sm:$0xff]
    %v22 = vld [vmem:[%s2 + $0x38] sm:$0xff]
    %v23 = vld [vmem:[%s2 + $0x40] sm:$0xff]
    %v24 = vld [vmem:[%s2 + $0x48] sm:$0xff]
    %v25 = vld [vmem:[%s2 + $0x50] sm:$0xff]
    %v26 = vld [vmem:[%s2 + $0x58] sm:$0xff]
    %v27 = vld [vmem:[%s2 + $0x60] sm:$0xff]
    %v28 = vld [vmem:[%s2 + $0x68] sm:$0xff]
    %v29 = vld [vmem:[%s2 + $0x70] sm:$0xff]
    %v30 = vld [vmem:[%s2 + $0x78] sm:$0xff]
    %vm31 = vcmask 261120
    %v33 = vsel %vm31, %v14, 0
    %v36 = vsel %vm31, %v15, 0
    %v39 = vsel %vm31, %v16, 0
    %v42 = vsel %vm31, %v17, 0
    %v45 = vsel %vm31, %v18, 0
    %v48 = vsel %vm31, %v19, 0
    %v51 = vsel %vm31, %v20, 0
    %v54 = vsel %vm31, %v21, 0
    %v57 = vsel %vm31, %v22, 0
    %v60 = vsel %vm31, %v23, 0
    %v63 = vsel %vm31, %v24, 0
    %v66 = vsel %vm31, %v25, 0
    %v69 = vsel %vm31, %v26, 0
    %v72 = vsel %vm31, %v27, 0
    %v75 = vsel %vm31, %v28, 0
    %v78 = vsel %vm31, %v29, 0
    %v81 = vsel %vm31, %v30, 0
    %83 = vmatprep.subr.mxu0 0.0
    %84 = vmatpush1.xpose.msra.mxu0 %v36
    %85 = vmatprep.subr.mxu0 0.0
    %86 = vmatpush1.xpose.msra.mxu0 %v39
    %87 = vmatprep.subr.mxu0 0.0
    %88 = vmatpush1.xpose.msra.mxu0 %v42
    %89 = vmatprep.subr.mxu0 0.0
    %90 = vmatpush1.xpose.msra.mxu0 %v45
    %91 = vmatprep.subr.mxu0 0.0
    %92 = vmatpush1.xpose.msra.mxu0 %v48
    %93 = vmatprep.subr.mxu0 0.0
    %94 = vmatpush1.xpose.msra.mxu0 %v51
    %95 = vmatprep.subr.mxu0 0.0
    %96 = vmatpush1.xpose.msra.mxu0 %v54
    %97 = vmatprep.subr.mxu0 0.0
    %98 = vmatpush1.xpose.msra.mxu0 %v57
    %99 = vmatprep.subr.mxu0 0.0
    %100 = vmatpush1.xpose.msra.mxu0 %v60
    %101 = vmatprep.subr.mxu0 0.0
    %102 = vmatpush1.xpose.msra.mxu0 %v63
    %103 = vmatprep.subr.mxu0 0.0
    %104 = vmatpush1.xpose.msra.mxu0 %v66
    %105 = vmatprep.subr.mxu0 0.0
    %106 = vmatpush1.xpose.msra.mxu0 %v69
    %107 = vmatprep.subr.mxu0 0.0
    %108 = vmatpush1.xpose.msra.mxu0 %v72
    %109 = vmatprep.subr.mxu0 0.0
    %110 = vmatpush1.xpose.msra.mxu0 %v75
    %111 = vmatprep.subr.mxu0 0.0
    %112 = vmatpush1.xpose.msra.mxu0 %v78
    %113 = vmatprep.subr.mxu0 0.0
    %114 = vmatpush1.xpose.msra.mxu0 %v81
    %115 = vmatprep.subr.mxu0 0.0
    %116 = vmatpush1.xpose.msra.mxu0 0.0
    %117 = vmatprep.subr.mxu0 0.0
    %118 = vmatpush1.xpose.msra.mxu0 0.0
    %119 = vmatprep.subr.mxu0 0.0
    %120 = vmatpush1.xpose.msra.mxu0 0.0
    %121 = vmatprep.subr.mxu0 0.0
    %122 = vmatpush1.xpose.msra.mxu0 0.0
    %123 = vmatprep.subr.mxu0 0.0
    %124 = vmatpush1.xpose.msra.mxu0 0.0
    %125 = vmatprep.subr.mxu0 0.0
    %126 = vmatpush1.xpose.msra.mxu0 0.0
    %127 = vmatprep.subr.mxu0 0.0
    %128 = vmatpush1.xpose.msra.mxu0 0.0
    %129 = vmatprep.subr.mxu0 0.0
    %130 = vmatpush1.xpose.msra.mxu0 0.0
    %131 = vmatprep.subr.mxu0 0.0
    %132 = vmatpush1.xpose.msra.mxu0 0.0
    %133 = vmatprep.subr.mxu0 0.0
    %134 = vmatpush1.xpose.msra.mxu0 0.0
    %135 = vmatprep.subr.mxu0 0.0
    %136 = vmatpush1.xpose.msra.mxu0 0.0
    %137 = vmatprep.subr.mxu0 0.0
    %138 = vmatpush1.xpose.msra.mxu0 0.0
    %139 = vmatprep.subr.mxu0 0.0
    %140 = vmatpush1.xpose.msra.mxu0 0.0
    %141 = vmatprep.subr.mxu0 0.0
    %142 = vmatpush1.xpose.msra.mxu0 0.0
    %143 = vmatprep.subr.mxu0 0.0
    %144 = vmatpush1.xpose.msra.mxu0 0.0
    %145 = vmatprep.subr.mxu0 0.0
    %146 = vmatpush1.xpose.msra.mxu0 0.0
    %147 = vmatprep.mubr.f32.mxu0 0.0
    %148 = vmatmul.mubr.f32.gmra.mrb[0].mxu0 %v33
    %v149 = vpop.f32.mrb[0].mxu0
    %v150 = vadd.f32 0.0, %v149
    %v151 = vpop.f32.mrb[0].mxu0
    %152 = vdwg.mxu0
    %s153 = sld [smem:[#allocation3]]
    %v154 = vlaneseq
    %v155 = vand.u32 %v154, 127
    %v156 = vstv %s153
    %vm157 = vcmp.lt.s32.totalorder %v155, %v156
    %v158 = vsel %vm157, %v150, -inf
    %159 = vmax.xlane.f32.xlu0 %v158
    %v160 = vpop.xlane.xlu0 %159
    %v161 = vsub.f32 %v158, %v160
    %v162 = vmul.f32 %v161, 1.442695
    %v163 = vpow.pop %v162
    %164 = vadd.xlane.f32.xlu0 %v163
    %v165 = vpop.xlane.xlu0 %164
    %v166 = vrcp.pop %v165
    %v167 = vmul.f32 %v163, %v166
    %168 = vst [vmem:[#allocation4] sm:$0xff] %v167
    // Predicated region
    $region10: #{tpu_custom_call.1} parent=1 // pred_check
      _
    $region11: #{tpu_custom_call.1} parent=1 // pred_check_branch
      %170 = sbr.rel (0) target = $region13
    $region12: #{tpu_custom_call.1} parent=1 // pred_region
      %s172 = ssub.s32 128, 128
      %173 = vsyncadd [#allocation5], %s172
      %s175 = sshll.u32 [#allocation4], 4
      %s176 = int_to_ptr.vmem [resolvable:$true] %s175
      %178 = dma.vmem_to_hbm [thread:$0]  %s176, 128, %s3, [#allocation5]
    $region13: #{tpu_custom_call.1} parent=1 // pred_fallthru
      _
    // Predicated region
    $region14: #{tpu_custom_call.1} parent=1 // pred_check
      _
    $region15: #{tpu_custom_call.1} parent=1 // pred_check_branch
      %180 = sbr.rel (0) target = $region17
    $region16: #{tpu_custom_call.1} parent=1 // pred_region
      %181 = dma.done [#allocation5], 128
    $region17: #{tpu_custom_call.1} parent=1 // pred_fallthru
      _
    %182 = vsyncpa [#allocation5], 1

</llo_original>
